<compile_context>
chip_gen: v6e
topology: v6e:2x2x1
jax: 0.10.0
libtpu: 0.0.40
codegen_flags: <defaults>
</compile_context>

<pallas_src>
import functools

import jax
import jax.numpy as jnp
from jax import lax
from jax.experimental import pallas as pl
from jax.experimental.pallas import tpu as pltpu

_LANES = 128


def _round_up(x, m):
    return ((x + m - 1) // m) * m


def _sublane_pack(dtype):
    # Minimum second-minor tile for the dtype: 8 (f32), 16 (bf16), 32 (int8/fp8).
    itemsize = jnp.dtype(dtype).itemsize
    return max(8, 8 * (4 // max(1, itemsize)))


def _default_block_rows():
    # ~2 MiB f32 blocks on v7x (3.2 TB/s HBM), ~1 MiB elsewhere.
    try:
        kind = jax.devices()[0].device_kind.lower()
    except Exception:
        return 2048
    if "v7" in kind:
        return 4096
    return 2048


def _mse_sum_kernel(pred_ref, tgt_ref, out_ref, acc_ref, *, valid_rows, block_rows):
    """Accumulate (pred - tgt)^2 into an (8, 128) per-split partial-sum tile.

    Grid = (n_splits, tiles_per_split).  acc_ref is a fixed (8, 128) f32 VMEM
    scratch; each (block_rows, 128) block is first folded sublane-tile-wise
    (VPU adds only), so the steady-state loop carries no per-vreg accumulator
    traffic.  The duplicated/dummy tile of the clamped index_map and the ragged
    last tile are both zeroed by the valid_rows row mask.
    """
    c = pl.program_id(0)            # split index ('parallel' axis)
    i = pl.program_id(1)            # reduction step within the split
    n_inner = pl.num_programs(1)

    @pl.when(i == 0)
    def _init():
        acc_ref[...] = jnp.zeros_like(acc_ref)

    # Cast to f32 in-kernel; HBM keeps the original dtype (bf16 inputs move
    # half the bytes).  Kernel is DMA-bound, so the f32 VPU work is free.
    d = pred_ref[...].astype(jnp.float32) - tgt_ref[...].astype(jnp.float32)
    sq = d * d

    # Global (unclamped) row index of the first row of this logical block.
    # For the dummy step of an odd tile count (index_map clamps the DMA), this
    # is >= valid_rows and the masked branch zeroes the whole contribution.
    row_base = (c * n_inner + i) * block_rows
    is_full = row_base + block_rows <= valid_rows

    @pl.when(is_full)
    def _acc_full():
        acc_ref[...] += jnp.sum(sq.reshape(block_rows // 8, 8, _LANES), axis=0)

    @pl.when(jnp.logical_not(is_full))
    def _acc_masked():
        row_ids = lax.broadcasted_iota(jnp.int32, sq.shape, 0) + row_base
        masked = jnp.where(row_ids < valid_rows, sq, 0.0)
        acc_ref[...] += jnp.sum(masked.reshape(block_rows // 8, 8, _LANES), axis=0)

    @pl.when(i == n_inner - 1)
    def _finalize():
        out_ref[...] = acc_ref[...]


def mse_loss_pallas(pred, target, reduction="mean", *, block_rows=None):
    """Equivalent of torch.nn.MSELoss(reduction=reduction)(pred, target)."""
    assert pred.shape == target.shape, "MSELoss requires matching shapes"
    n = pred.size
    assert n > 0

    if reduction not in ("mean", "sum"):
        # TODO(synk): reduction='none' returns a full per-element tensor; not wired here.
        raise NotImplementedError(f"reduction={reduction}")

    p_dt = jnp.dtype(pred.dtype)
    t_dt = jnp.dtype(target.dtype)

    flat_p = pred.reshape(-1)
    flat_t = target.reshape(-1)

    rem = n % _LANES
    n_main = n - rem

    # Ragged tail: a tiny XLA reduce over the last <=127 elements; no full-array pad.
    tail_sum = None
    if rem:
        p_tail = flat_p[n_main:].astype(jnp.float32)
        t_tail = flat_t[n_main:].astype(jnp.float32)
        tail_sum = jnp.sum((p_tail - t_tail) ** 2)

    if n_main == 0:
        total = tail_sum
    else:
        p_main = flat_p[:n_main] if rem else flat_p
        t_main = flat_t[:n_main] if rem else flat_t
        p2 = p_main.reshape(-1, _LANES)
        t2 = t_main.reshape(-1, _LANES)
        rows = p2.shape[0]

        if block_rows is None:
            block_rows = _default_block_rows()
        # Keep the per-step DMA byte size roughly constant for narrow dtypes.
        itemsize = max(p_dt.itemsize, t_dt.itemsize)
        block_rows = block_rows * max(1, 4 // itemsize)

        pack = max(_sublane_pack(p_dt), _sublane_pack(t_dt))
        br = min(_round_up(block_rows, pack), _round_up(rows, pack))

        total_tiles = pl.cdiv(rows, br)

        # Unconditional 2-way split over the 'parallel' leading axis whenever
        # there are >=2 tiles; tiles_per_split rounds up and the clamped
        # index_map + valid_rows mask handle the dummy tile for odd counts.
        n_splits = 2 if total_tiles >= 2 else 1
        tiles_per_split = pl.cdiv(total_tiles, n_splits)
        last_tile = total_tiles - 1

        def in_map(c, i, T=tiles_per_split, last=last_tile):
            return (jnp.minimum(c * T + i, last), 0)

        kernel = functools.partial(_mse_sum_kernel, valid_rows=rows, block_rows=br)

        cost = pl.CostEstimate(
            flops=3 * rows * _LANES,
            transcendentals=0,
            bytes_accessed=rows * _LANES * (p_dt.itemsize + t_dt.itemsize)
            + n_splits * 8 * _LANES * 4,
        )

        partials = pl.pallas_call(
            kernel,
            out_shape=jax.ShapeDtypeStruct((n_splits * 8, _LANES), jnp.float32),
            grid=(n_splits, tiles_per_split),
            in_specs=[
                pl.BlockSpec((br, _LANES), in_map),
                pl.BlockSpec((br, _LANES), in_map),
            ],
            out_specs=pl.BlockSpec((8, _LANES), lambda c, i: (c, 0)),
            scratch_shapes=[pltpu.VMEM((8, _LANES), jnp.float32)],
            compiler_params=pltpu.CompilerParams(
                dimension_semantics=("parallel", "arbitrary"),
            ),
            cost_estimate=cost,
        )(p2, t2)

        total = jnp.sum(partials)
        if tail_sum is not None:
            total = total + tail_sum

    if reduction == "mean":
        # Note: f32 division of n; relative error ~1e-7 for n > 2^24 vs torch f32.
        return total / jnp.float32(n)
    return total


def custom_mse_loss(batch, model_out, reduction="mean", *, min_pallas_elems=65536):
    """Forward of CustomMSELoss."""
    pred = model_out["pred_size"]
    target = batch["lengths"]
    if reduction in ("mean", "sum") and pred.size < min_pallas_elems:
        # Tiny inputs (per-example length regression): a fused XLA
        # elementwise+reduce beats pallas_call launch overhead.
        d = pred.astype(jnp.float32) - target.astype(jnp.float32)
        sq = d * d
        return jnp.mean(sq) if reduction == "mean" else jnp.sum(sq)
    return mse_loss_pallas(pred, target, reduction)


if __name__ == "__main__":
    key = jax.random.PRNGKey(0)
    keys = jax.random.split(key, 16)

    # --- Module-level forward: per-example length regression targets.
    B = 8
    lengths = jax.random.uniform(keys[0], (B,), dtype=jnp.float32) * 100.0
    pred_size = lengths + jax.random.normal(keys[1], (B,), dtype=jnp.float32)
    batch = {"lengths": lengths}
    model_out = {"pred_size": pred_size}
    loss = jax.block_until_ready(custom_mse_loss(batch, model_out, reduction="mean"))
    ref = jnp.mean((pred_size - lengths) ** 2)
    assert jnp.allclose(loss, ref, rtol=1e-6, atol=1e-6), (loss, ref)

    # --- Exercise the Pallas kernel path directly (small shapes; block_rows
    #     overrides force the multi-tile / 2-way-split / dummy-tile paths).
    test_cases = [
        # (shape, block_rows override or None)
        ((2, 4, 16, 16), None),   # n % 128 == 0, single (sub-block) tile
        ((3, 37, 5), None),       # ragged: kernel on first 512 elems + XLA tail of 43
        ((40, 128), 16),          # 3 tiles (odd) -> 2 splits + clamped dummy tile
        ((64, 512), 8),           # 32 tiles -> 2 splits x 16 steps
        ((3, 5), None),           # n < 128 -> pure XLA tail path
    ]
    for si, (shape, br_override) in enumerate(test_cases):
        kt, kp = keys[2 + 2 * si], keys[3 + 2 * si]
        t = jax.random.normal(kt, shape, dtype=jnp.float32)
        p = t + 0.1 * jax.random.normal(kp, shape, dtype=jnp.float32)
        kwargs = {} if br_override is None else {"block_rows": br_override}
        got_mean = jax.block_until_ready(mse_loss_pallas(p, t, "mean", **kwargs))
        got_sum = jax.block_until_ready(mse_loss_pallas(p, t, "sum", **kwargs))
        ref_mean = jnp.mean((p - t) ** 2)
        ref_sum = jnp.sum((p - t) ** 2)
        assert jnp.allclose(got_mean, ref_mean, rtol=1e-5, atol=1e-6), (shape, got_mean, ref_mean)
        assert jnp.allclose(got_sum, ref_sum, rtol=1e-5, atol=1e-3), (shape, got_sum, ref_sum)

    # --- bf16 inputs: kept bf16 in HBM, cast to f32 inside the kernel,
    #     block rows doubled / rounded to the 16-row packed tile.
    t_f = jax.random.normal(keys[12], (32, 512), dtype=jnp.float32)
    p_f = t_f + 0.1 * jax.random.normal(keys[13], (32, 512), dtype=jnp.float32)
    t_bf16 = t_f.astype(jnp.bfloat16)
    p_bf16 = p_f.astype(jnp.bfloat16)
    got_bf = jax.block_until_ready(mse_loss_pallas(p_bf16, t_bf16, "mean", block_rows=16))
    ref_bf = jnp.mean((p_bf16.astype(jnp.float32) - t_bf16.astype(jnp.float32)) ** 2)
    assert jnp.allclose(got_bf, ref_bf, rtol=1e-5, atol=1e-6), (got_bf, ref_bf)

    print("KERNEL_OK")
</pallas_src>

<mosaic_0001>
module attributes {stable_mosaic.version = 11 : i64} {
  func.func @_mse_sum_kernel(%arg0: i32, %arg1: i32, %arg2: memref<16x128xf32, #tpu.memory_space<vmem>>, %arg3: memref<16x128xf32, #tpu.memory_space<vmem>>, %arg4: memref<8x128xf32, #tpu.memory_space<vmem>>, %arg5: memref<8x128xf32, #tpu.memory_space<vmem>>) attributes {dimension_semantics = [#tpu.dimension_semantics<parallel>, #tpu.dimension_semantics<arbitrary>], iteration_bounds = array<i64: 1, 1>, scalar_prefetch = 0 : i64, scratch_operands = 1 : i64, tpu.core_type = #tpu.core_type<tc>, window_params = [{transform_indices = @transform_0, window_bounds = array<i64: 16, 128>}, {transform_indices = @transform_1, window_bounds = array<i64: 16, 128>}, {transform_indices = @transform_2, window_bounds = array<i64: 8, 128>}]} {
    %c0_i32 = arith.constant 0 : i32
    %0 = arith.cmpi eq, %arg1, %c0_i32 : i32
    %1 = arith.extui %0 : i1 to i32
    %c0_i32_0 = arith.constant 0 : i32
    %2 = arith.cmpi ne, %1, %c0_i32_0 : i32
    scf.if %2 {
      %cst = arith.constant 0.000000e+00 : f32
      %20 = vector.broadcast %cst : f32 to vector<8x128xf32>
      %c0_10 = arith.constant 0 : index
      %c0_11 = arith.constant 0 : index
      %21 = vector.load %arg5[%c0_10, %c0_11] : memref<8x128xf32, #tpu.memory_space<vmem>>, vector<8x128xf32>
      tpu.vector_store %arg5[%c0_10, %c0_11], %20 {strides = array<i32>} : memref<8x128xf32, #tpu.memory_space<vmem>>, vector<8x128xf32>,
    } else {
    }
    %c0 = arith.constant 0 : index
    %c0_1 = arith.constant 0 : index
    %3 = vector.load %arg2[%c0, %c0_1] : memref<16x128xf32, #tpu.memory_space<vmem>>, vector<16x128xf32>
    %c0_2 = arith.constant 0 : index
    %c0_3 = arith.constant 0 : index
    %4 = vector.load %arg3[%c0_2, %c0_3] : memref<16x128xf32, #tpu.memory_space<vmem>>, vector<16x128xf32>
    %5 = arith.subf %3, %4 : vector<16x128xf32>
    %6 = arith.mulf %5, %5 : vector<16x128xf32>
    %c1_i32 = arith.constant 1 : i32
    %7 = arith.muli %arg0, %c1_i32 : i32
    %8 = arith.addi %7, %arg1 : i32
    %c16_i32 = arith.constant 16 : i32
    %9 = arith.muli %8, %c16_i32 : i32
    %c16_i32_4 = arith.constant 16 : i32
    %10 = arith.addi %9, %c16_i32_4 : i32
    %c16_i32_5 = arith.constant 16 : i32
    %11 = arith.cmpi sle, %10, %c16_i32_5 : i32
    %12 = arith.extui %11 : i1 to i32
    %c0_i32_6 = arith.constant 0 : i32
    %13 = arith.cmpi ne, %12, %c0_i32_6 : i32
    scf.if %13 {
      %c0_10 = arith.constant 0 : index
      %c0_11 = arith.constant 0 : index
      %20 = vector.load %arg5[%c0_10, %c0_11] : memref<8x128xf32, #tpu.memory_space<vmem>>, vector<8x128xf32>
      %21 = vector.shape_cast %6 : vector<16x128xf32> to vector<2x8x128xf32>
      %cst = arith.constant dense<0.000000e+00> : vector<8x128xf32>
      %22 = vector.multi_reduction <add>, %21, %cst [0] : vector<2x8x128xf32> to vector<8x128xf32>
      %23 = arith.addf %20, %22 : vector<8x128xf32>
      %c0_12 = arith.constant 0 : index
      %c0_13 = arith.constant 0 : index
      %24 = vector.load %arg5[%c0_12, %c0_13] : memref<8x128xf32, #tpu.memory_space<vmem>>, vector<8x128xf32>
      tpu.vector_store %arg5[%c0_12, %c0_13], %23 {strides = array<i32>} : memref<8x128xf32, #tpu.memory_space<vmem>>, vector<8x128xf32>,
    } else {
    }
    %true = arith.constant true
    %14 = arith.xori %11, %true : i1
    %15 = arith.extui %14 : i1 to i32
    %c0_i32_7 = arith.constant 0 : i32
    %16 = arith.cmpi ne, %15, %c0_i32_7 : i32
    scf.if %16 {
      %20 = tpu.iota {dimensions = array<i32: 0>} : vector<16x128xi32>
      %21 = vector.broadcast %9 : i32 to vector<16x128xi32>
      %22 = arith.addi %20, %21 : vector<16x128xi32>
      %c16_i32_10 = arith.constant 16 : i32
      %23 = vector.broadcast %c16_i32_10 : i32 to vector<16x128xi32>
      %24 = arith.cmpi slt, %22, %23 : vector<16x128xi32>
      %cst = arith.constant 0.000000e+00 : f32
      %25 = vector.broadcast %cst : f32 to vector<16x128xf32>
      %26 = arith.select %24, %6, %25 : vector<16x128xi1>, vector<16x128xf32>
      %c0_11 = arith.constant 0 : index
      %c0_12 = arith.constant 0 : index
      %27 = vector.load %arg5[%c0_11, %c0_12] : memref<8x128xf32, #tpu.memory_space<vmem>>, vector<8x128xf32>
      %28 = vector.shape_cast %26 : vector<16x128xf32> to vector<2x8x128xf32>
      %cst_13 = arith.constant dense<0.000000e+00> : vector<8x128xf32>
      %29 = vector.multi_reduction <add>, %28, %cst_13 [0] : vector<2x8x128xf32> to vector<8x128xf32>
      %30 = arith.addf %27, %29 : vector<8x128xf32>
      %c0_14 = arith.constant 0 : index
      %c0_15 = arith.constant 0 : index
      %31 = vector.load %arg5[%c0_14, %c0_15] : memref<8x128xf32, #tpu.memory_space<vmem>>, vector<8x128xf32>
      tpu.vector_store %arg5[%c0_14, %c0_15], %30 {strides = array<i32>} : memref<8x128xf32, #tpu.memory_space<vmem>>, vector<8x128xf32>,
    } else {
    }
    %c0_i32_8 = arith.constant 0 : i32
    %17 = arith.cmpi eq, %arg1, %c0_i32_8 : i32
    %18 = arith.extui %17 : i1 to i32
    %c0_i32_9 = arith.constant 0 : i32
    %19 = arith.cmpi ne, %18, %c0_i32_9 : i32
    scf.if %19 {
      %c0_10 = arith.constant 0 : index
      %c0_11 = arith.constant 0 : index
      %20 = vector.load %arg5[%c0_10, %c0_11] : memref<8x128xf32, #tpu.memory_space<vmem>>, vector<8x128xf32>
      %c0_12 = arith.constant 0 : index
      %c0_13 = arith.constant 0 : index
      %21 = vector.load %arg4[%c0_12, %c0_13] : memref<8x128xf32, #tpu.memory_space<vmem>>, vector<8x128xf32>
      tpu.vector_store %arg4[%c0_12, %c0_13], %20 {strides = array<i32>} : memref<8x128xf32, #tpu.memory_space<vmem>>, vector<8x128xf32>,
    } else {
    }
    return
  }
  func.func @transform_0(%arg0: i32, %arg1: i32) -> (i32, i32) {
    %c1_i32 = arith.constant 1 : i32
    %0 = arith.muli %arg0, %c1_i32 : i32
    %1 = arith.addi %0, %arg1 : i32
    %c0_i32 = arith.constant 0 : i32
    %2 = arith.minsi %1, %c0_i32 : i32
    %c0_i32_0 = arith.constant 0 : i32
    %c0_i32_1 = arith.constant 0 : i32
    return %2, %c0_i32_0 : i32, i32
  }
  func.func @transform_1(%arg0: i32, %arg1: i32) -> (i32, i32) {
    %c1_i32 = arith.constant 1 : i32
    %0 = arith.muli %arg0, %c1_i32 : i32
    %1 = arith.addi %0, %arg1 : i32
    %c0_i32 = arith.constant 0 : i32
    %2 = arith.minsi %1, %c0_i32 : i32
    %c0_i32_0 = arith.constant 0 : i32
    %c0_i32_1 = arith.constant 0 : i32
    return %2, %c0_i32_0 : i32, i32
  }
  func.func @transform_2(%arg0: i32, %arg1: i32) -> (i32, i32) {
    %c0_i32 = arith.constant 0 : i32
    %c0_i32_0 = arith.constant 0 : i32
    return %arg0, %c0_i32 : i32, i32
  }
}

</mosaic_0001>

<llo_original>
// kernel: tpu_custom_call.1
$region0: #{tpu_custom_call.1}
  #allocation0 [shape = 'u32[]', space=smem, size = 0x4, offset = 0x4, fixed_abs, tag = 'smem constant byte address 0x4 - core index']
  #allocation1 [shape = 'u32[144,128]{1,0:T(1,128)}', space=vmem, size = 0x12000, scoped, tag = 'internal scratch']
  #allocation2 [shape = 'f32[8,128]{1,0:T(8,128)}', space=vmem, size = 0x1000, scoped, tag = 'scratch operand']
  %s0 = inlined_call_operand.hbm [shape: f32[16,128], index: 0, kind: input, shape index: {}]
  %s1 = inlined_call_operand.hbm [shape: f32[16,128], index: 1, kind: input, shape index: {}]
  %s2 = inlined_call_operand.hbm [shape: f32[8,128], index: 2, kind: output, shape index: {}]
  %s3 = sld [smem:[#allocation0]]
  $region42: #{tpu_custom_call.1} parent=0
    _
  %s5 = ssub.s32 1, %s3
  %s6 = scalar_select 0, %s5, %s3
  $region1: #{tpu_custom_call.1} parent=0
    #allocation3 [shape = 'u8[8192]{0}', space=vmem, size = 0x2000, scoped, tag = 'input window, operand 0, single buffered']
    #allocation4 [shape = 's32[1]{0}', space=sflag, size = 0x4, scoped, tag = 'scoped memory for tpu_custom_call.1']
    #allocation5 [shape = 's32[1]{0}', space=sflag, size = 0x4, scoped, tag = 'scoped memory for tpu_custom_call.1']
    #allocation6 [shape = 'u8[8192]{0}', space=vmem, size = 0x2000, scoped, tag = 'input window, operand 1, single buffered']
    #allocation7 [shape = 's32[1]{0}', space=sflag, size = 0x4, scoped, tag = 'scoped memory for tpu_custom_call.1']
    #allocation8 [shape = 'u8[4096]{0}', space=vmem, size = 0x1000, scoped, tag = 'output window, operand 0, single buffered']
    %7 = vsyncpa [#allocation4], 0
    %8 = vsyncpa [#allocation7], 0
    %9 = vsyncpa [#allocation5], 0
    // Predicated region
    $region2: #{tpu_custom_call.1} parent=1 // pred_check
      _
    $region3: #{tpu_custom_call.1} parent=1 // pred_check_branch
      %11 = sbr.rel (0) target = $region5
    $region4: #{tpu_custom_call.1} parent=1 // pred_region
      %s12 = sadd.s32 0, 0
      %p13 = scmp.lt.s32.totalorder %s12, 0
      %s14 = scalar_select %p13, %s12, 0
      %s15 = smul.u32 2, %s14
      %s17 = ssub.s32 256, 256
      %18 = vsyncadd [#allocation4], %s17
      %s19 = smul.addr %s15, 128
      %s20 = scalar_lea.hbm %s0, %s19
      %s21 = sshll.u32 [#allocation3], 4
      %s22 = int_to_ptr.vmem [resolvable:$true] %s21
      %27 = dma.hbm_to_vmem [thread:$0]  %s20, 256, %s22, [#allocation4], 128, 128, 8
    $region5: #{tpu_custom_call.1} parent=1 // pred_fallthru
      _
    // Predicated region
    $region6: #{tpu_custom_call.1} parent=1 // pred_check
      _
    $region7: #{tpu_custom_call.1} parent=1 // pred_check_branch
      %29 = sbr.rel (0) target = $region9
    $region8: #{tpu_custom_call.1} parent=1 // pred_region
      %s30 = sadd.s32 0, 0
      %p31 = scmp.lt.s32.totalorder %s30, 0
      %s32 = scalar_select %p31, %s30, 0
      %s33 = smul.u32 2, %s32
      %s35 = ssub.s32 256, 256
      %36 = vsyncadd [#allocation7], %s35
      %s37 = smul.addr %s33, 128
      %s38 = scalar_lea.hbm %s1, %s37
      %s39 = sshll.u32 [#allocation6], 4
      %s40 = int_to_ptr.vmem [resolvable:$true] %s39
      %45 = dma.hbm_to_vmem [thread:$0]  %s38, 256, %s40, [#allocation7], 128, 128, 8
    $region9: #{tpu_custom_call.1} parent=1 // pred_fallthru
      _
    // Predicated region
    $region10: #{tpu_custom_call.1} parent=1 // pred_check
      _
    $region11: #{tpu_custom_call.1} parent=1 // pred_check_branch
      %47 = sbr.rel (0) target = $region13
    $region12: #{tpu_custom_call.1} parent=1 // pred_region
      %48 = dma.done [#allocation4], 256
    $region13: #{tpu_custom_call.1} parent=1 // pred_fallthru
      _
    // Predicated region
    $region14: #{tpu_custom_call.1} parent=1 // pred_check
      _
    $region15: #{tpu_custom_call.1} parent=1 // pred_check_branch
      %50 = sbr.rel (0) target = $region17
    $region16: #{tpu_custom_call.1} parent=1 // pred_region
      %51 = dma.done [#allocation7], 256
    $region17: #{tpu_custom_call.1} parent=1 // pred_fallthru
      _
    %s52 = sadd.s32 0, 0
    %p53 = scmp.lt.s32.totalorder %s52, 0
    %s54 = scalar_select %p53, %s52, 0
    %s55 = smul.u32 2, %s54
    %s56 = sadd.s32 0, 0
    %p57 = scmp.lt.s32.totalorder %s56, 0
    %s58 = scalar_select %p57, %s56, 0
    %s59 = smul.u32 2, %s58
    %p60 = scmp.eq.s32.totalorder 0, 0
    // Predicated region
    $region18: #{tpu_custom_call.1} parent=1 // pred_check
      %p61 = pneg %p60
    $region19: #{tpu_custom_call.1} parent=1 // pred_check_branch
      %63 = sbr.rel (%p61) target = $region21
    $region20: #{tpu_custom_call.1} parent=1 // pred_region
      %64 = vst [vmem:[#allocation2] sm:$0xff] 0.0
    $region21: #{tpu_custom_call.1} parent=1 // pred_fallthru
      _
    %v65 = vld [vmem:[#allocation3] sm:$0xff]
    %v66 = vld [vmem:[#allocation3 + $0x8] sm:$0xff]
    %v67 = vld [vmem:[#allocation6] sm:$0xff]
    %v68 = vld [vmem:[#allocation6 + $0x8] sm:$0xff]
    %v69 = vsub.f32 %v65, %v67
    %v70 = vsub.f32 %v66, %v68
    %v71 = vmul.f32 %v69, %v69
    %v72 = vmul.f32 %v70, %v70
    %s73 = sadd.s32 0, 0
    %s74 = smul.u32 %s73, 16
    %s75 = sadd.s32 %s74, 16
    %p76 = scmp.le.s32.totalorder %s75, 16
    // Predicated region
    $region22: #{tpu_custom_call.1} parent=1 // pred_check
      %p77 = pneg %p76
    $region23: #{tpu_custom_call.1} parent=1 // pred_check_branch
      %79 = sbr.rel (%p77) target = $region25
    $region24: #{tpu_custom_call.1} parent=1 // pred_region
      %v80 = vld [vmem:[#allocation2] sm:$0xff]
      %v81 = vadd.f32 %v71, %v72
      %v82 = vadd.f32 %v80, %v81
      %83 = vst [vmem:[#allocation2] sm:$0xff] %v82
    $region25: #{tpu_custom_call.1} parent=1 // pred_fallthru
      _
    %p84 = scmp.gt.s32.totalorder %s75, 16
    // Predicated region
    $region26: #{tpu_custom_call.1} parent=1 // pred_check
      %p85 = pneg %p84
    $region27: #{tpu_custom_call.1} parent=1 // pred_check_branch
      %87 = sbr.rel (%p85) target = $region29
    $region28: #{tpu_custom_call.1} parent=1 // pred_region
      %v88 = vlaneseq
      %v89 = vshrl.u32 %v88, 7
      %v90 = vadd.s32 %v89, 8
      %v91 = vstv %s74
      %v92 = vadd.s32 %v89, %v91
      %v93 = vadd.s32 %v90, %v91
      %vm94 = vcmp.lt.s32.totalorder %v92, 16
      %vm95 = vcmp.lt.s32.totalorder %v93, 16
      %v96 = vsel %vm94, %v71, 0.0
      %v97 = vsel %vm95, %v72, 0.0
      %v98 = vld [vmem:[#allocation2] sm:$0xff]
      %v99 = vadd.f32 %v96, %v97
      %v100 = vadd.f32 %v98, %v99
      %101 = vst [vmem:[#allocation2] sm:$0xff] %v100
    $region29: #{tpu_custom_call.1} parent=1 // pred_fallthru
      _
    // Predicated region
    $region30: #{tpu_custom_call.1} parent=1 // pred_check
      %p102 = pneg %p60
    $region31: #{tpu_custom_call.1} parent=1 // pred_check_branch
      %104 = sbr.rel (%p102) target = $region33
    $region32: #{tpu_custom_call.1} parent=1 // pred_region
      %v105 = vld [vmem:[#allocation2] sm:$0xff]
      %106 = vst [vmem:[#allocation8] sm:$0xff] %v105
    $region33: #{tpu_custom_call.1} parent=1 // pred_fallthru
      _
    // Predicated region
    $region34: #{tpu_custom_call.1} parent=1 // pred_check
      _
    $region35: #{tpu_custom_call.1} parent=1 // pred_check_branch
      %108 = sbr.rel (0) target = $region37
    $region36: #{tpu_custom_call.1} parent=1 // pred_region
      %s110 = ssub.s32 128, 128
      %111 = vsyncadd [#allocation5], %s110
      %s113 = sshll.u32 [#allocation8], 4
      %s114 = int_to_ptr.vmem [resolvable:$true] %s113
      %116 = dma.vmem_to_hbm [thread:$0]  %s114, 128, %s2, [#allocation5]
    $region37: #{tpu_custom_call.1} parent=1 // pred_fallthru
      _
    // Predicated region
    $region38: #{tpu_custom_call.1} parent=1 // pred_check
      _
    $region39: #{tpu_custom_call.1} parent=1 // pred_check_branch
      %118 = sbr.rel (0) target = $region41
    $region40: #{tpu_custom_call.1} parent=1 // pred_region
      %119 = dma.done [#allocation5], 128
    $region41: #{tpu_custom_call.1} parent=1 // pred_fallthru
      _
    %120 = vsyncpa [#allocation4], 1
    %121 = vsyncpa [#allocation7], 1
    %122 = vsyncpa [#allocation5], 1

</llo_original>
